<compile_context>
chip_gen: v7x
topology: tpu7x:2x2x1
jax: 0.10.0
libtpu: 0.0.40
codegen_flags: <defaults>
</compile_context>

<pallas_src>
import math
import numpy as np
import jax
import jax.numpy as jnp
from jax import lax
from jax.experimental import pallas as pl
from jax.experimental.pallas import tpu as pltpu

F32 = jnp.float32
BF16 = jnp.bfloat16
LANES = 128
_INV_SQRT2 = 1.0 / math.sqrt(2.0)


def _round_up(x, m):
    return ((x + m - 1) // m) * m


def _vmem_limit_bytes():
    """Generation-aware scoped-VMEM budget (v7x: 64 MiB physical; v5e/v6e: 128 MiB)."""
    try:
        cap = getattr(pltpu.get_tpu_info(), "vmem_capacity_bytes", None)
        if cap:
            return max(32 * 1024 * 1024, min(100 * 1024 * 1024, (int(cap) * 3) // 4))
    except Exception:
        pass
    return 64 * 1024 * 1024


_VMEM_LIMIT = _vmem_limit_bytes()


def _cparams(n_axes):
    return pltpu.CompilerParams(dimension_semantics=("parallel",) * n_axes,
                                vmem_limit_bytes=_VMEM_LIMIT)


def _row_tile(m, target=2048):
    """Largest row tile <= target (multiple of 8) that still yields >= 2 grid blocks."""
    half = _round_up(-(-m // 2), 8)
    return max(8, min(target, half))


def _block_counts(m, tile, nblocks):
    """Valid-row count per grid block (host-side, for Chan's variance combination)."""
    return jnp.asarray(np.minimum(tile, m - tile * np.arange(nblocks)), dtype=F32)


# ----------------------------------------------------------------------------
# Kernel 1: fused [BN-apply + act] -> [PosE add] -> matmul -> per-block BN stats
# ----------------------------------------------------------------------------
def matmul_bn_fused(x, w, *, scale=None, shift=None, act=None,
                    pose=None, emit_pre=False, out_dtype=BF16):
    """pre = act(x*scale + shift)                       (if scale given, else pre = x)
       pre = pre + sin(sum_c xyz[:,c]*selcoef[c,:] + phase)   (if pose given; cos == +pi/2)
       y   = pre @ w            (bf16 MXU, f32 accumulate)
    Returns (y, stats, counts[, pre]).  stats[b] = per-block [channel sum of y, sum of y^2]
    in f32 (padded rows of the partial last block masked), counts[b] = valid rows/block."""
    M, Cin = x.shape
    Cout = w.shape[1]
    TM = _row_tile(M)
    nb = -(-M // TM)
    needs_mask = (M % TM) != 0          # static: skip the masking epilogue entirely if even

    has_aff = scale is not None
    has_pose = pose is not None
    if has_pose:
        xyz, selcoef, phase = pose       # [M,3] f32, [3,Cin] f32 (coef folded in), [1,Cin]

    def kernel(*refs):
        it = iter(refs)
        x_ref = next(it)
        if has_aff:
            s_ref, t_ref = next(it), next(it)
        if has_pose:
            z_ref, sel_ref, p_ref = next(it), next(it), next(it)
        w_ref = next(it)
        y_ref = next(it)
        st_ref = next(it)
        pre_ref = next(it) if emit_pre else None

        pre = x_ref[...]
        if has_aff:
            pre = pre.astype(F32) * s_ref[...] + t_ref[...]
            if act == "relu":
                pre = jnp.maximum(pre, 0.0)
            elif act == "gelu":                          # exact erf-based GELU
                pre = 0.5 * pre * (1.0 + lax.erf(pre * _INV_SQRT2))
        if has_pose:
            z = z_ref[...].astype(F32)                   # [TM, 3]
            sel = sel_ref[...]                           # [3, Cin]  (coef folded in)
            arg = p_ref[...]                             # [1, Cin]  (phase)
            arg = arg + z[:, 0:1] * sel[0:1, :]          # 3 lane-broadcast FMAs (VPU),
            arg = arg + z[:, 1:2] * sel[1:2, :]          # no second MXU matmul
            arg = arg + z[:, 2:3] * sel[2:3, :]
            pre = pre + jnp.sin(arg)                     # single transcendental (EUP)
        if emit_pre:
            pre_ref[...] = pre.astype(pre_ref.dtype)

        y = jnp.dot(pre.astype(w_ref.dtype), w_ref[...], preferred_element_type=F32)
        y_ref[...] = y.astype(y_ref.dtype)

        if needs_mask:
            rows = lax.broadcasted_iota(jnp.int32, (TM, 1), 0) + pl.program_id(0) * TM
            valid = rows < M
            ys = jnp.where(valid, y, 0.0)
            yq = jnp.where(valid, y * y, 0.0)
        else:
            ys, yq = y, y * y
        st_ref[...] = jnp.concatenate(
            [jnp.sum(ys, axis=0, keepdims=True),
             jnp.sum(yq, axis=0, keepdims=True)], axis=0)[None]

    operands = [x]
    in_specs = [pl.BlockSpec((TM, Cin), lambda i: (i, 0))]
    if has_aff:
        operands += [scale.reshape(1, Cin).astype(F32),
                     shift.reshape(1, Cin).astype(F32)]
        in_specs += [pl.BlockSpec((1, Cin), lambda i: (0, 0))] * 2
    if has_pose:
        operands += [xyz, selcoef.astype(F32), phase.astype(F32)]
        in_specs += [pl.BlockSpec((TM, 3), lambda i: (i, 0)),
                     pl.BlockSpec((3, Cin), lambda i: (0, 0)),
                     pl.BlockSpec((1, Cin), lambda i: (0, 0))]
    operands += [w]
    in_specs += [pl.BlockSpec((Cin, Cout), lambda i: (0, 0))]

    out_shapes = [jax.ShapeDtypeStruct((M, Cout), out_dtype),
                  jax.ShapeDtypeStruct((nb, 2, Cout), F32)]
    out_specs = [pl.BlockSpec((TM, Cout), lambda i: (i, 0)),
                 pl.BlockSpec((1, 2, Cout), lambda i: (i, 0, 0))]
    if emit_pre:
        out_shapes.append(jax.ShapeDtypeStruct((M, Cin), out_dtype))
        out_specs.append(pl.BlockSpec((TM, Cin), lambda i: (i, 0)))

    outs = pl.pallas_call(
        kernel,
        out_shape=tuple(out_shapes),
        grid=(nb,),
        in_specs=in_specs,
        out_specs=tuple(out_specs),
        compiler_params=_cparams(1),
    )(*operands)

    counts = _block_counts(M, TM, nb)
    if emit_pre:
        y, st, pre = outs
        return y, st, counts, pre
    y, st = outs
    return y, st, counts


# ----------------------------------------------------------------------------
# Kernel 2: standalone per-channel affine (BN apply) + activation
# ----------------------------------------------------------------------------
def affine_act(x, scale, shift, act, out_dtype=BF16):
    M, C = x.shape
    TM = _row_tile(M)
    nb = -(-M // TM)

    def kernel(x_ref, s_ref, t_ref, o_ref):
        y = x_ref[...].astype(F32) * s_ref[...] + t_ref[...]
        if act == "relu":
            y = jnp.maximum(y, 0.0)
        elif act == "gelu":
            y = 0.5 * y * (1.0 + lax.erf(y * _INV_SQRT2))
        o_ref[...] = y.astype(o_ref.dtype)

    return pl.pallas_call(
        kernel,
        out_shape=jax.ShapeDtypeStruct((M, C), out_dtype),
        grid=(nb,),
        in_specs=[pl.BlockSpec((TM, C), lambda i: (i, 0)),
                  pl.BlockSpec((1, C), lambda i: (0, 0)),
                  pl.BlockSpec((1, C), lambda i: (0, 0))],
        out_specs=pl.BlockSpec((TM, C), lambda i: (i, 0)),
        compiler_params=_cparams(1),
    )(x, scale.reshape(1, C).astype(F32), shift.reshape(1, C).astype(F32))


# ----------------------------------------------------------------------------
# Kernel 3: fused BN-apply + residual + ReLU + max over K + pooled BN-stats
# ----------------------------------------------------------------------------
def bn_res_relu_maxpool(y_raw, h, scale, shift, K, out_dtype=F32):
    """y_raw, h: [R*K, C]. pooled[r] = max_k relu(y[r,k]*scale + shift + h[r,k])."""
    M, C = y_raw.shape
    R = M // K
    y3 = y_raw.reshape(R, K, C)
    h3 = h.reshape(R, K, C)

    GB = max(8, (max(1, 2048 // K) // 8) * 8)            # ~2K flat rows per block
    GB = min(GB, max(8, _round_up(-(-R // 2), 8)))        # at least 2 blocks (v7x 2 TCs)
    if GB >= R:
        GB = R                                            # tiny R: single full block
    nb = -(-R // GB)
    needs_mask = (R % GB) != 0

    def kernel(y_ref, h_ref, s_ref, t_ref, o_ref, st_ref):
        w = y_ref[...].astype(F32) * s_ref[...] + t_ref[...] + h_ref[...].astype(F32)
        w = jnp.maximum(w, 0.0)
        pooled = jnp.max(w, axis=1)                                   # [GB, C]
        o_ref[...] = pooled.astype(o_ref.dtype)
        if needs_mask:
            rows = lax.broadcasted_iota(jnp.int32, (GB, 1), 0) + pl.program_id(0) * GB
            valid = rows < R
            ps = jnp.where(valid, pooled, 0.0)
            pq = jnp.where(valid, pooled * pooled, 0.0)
        else:
            ps, pq = pooled, pooled * pooled
        st_ref[...] = jnp.concatenate(
            [jnp.sum(ps, axis=0, keepdims=True),
             jnp.sum(pq, axis=0, keepdims=True)], axis=0)[None]

    pooled, stats = pl.pallas_call(
        kernel,
        out_shape=(jax.ShapeDtypeStruct((R, C), out_dtype),
                   jax.ShapeDtypeStruct((nb, 2, C), F32)),
        grid=(nb,),
        in_specs=[pl.BlockSpec((GB, K, C), lambda i: (i, 0, 0)),
                  pl.BlockSpec((GB, K, C), lambda i: (i, 0, 0)),
                  pl.BlockSpec((1, C), lambda i: (0, 0)),
                  pl.BlockSpec((1, C), lambda i: (0, 0))],
        out_specs=(pl.BlockSpec((GB, C), lambda i: (i, 0)),
                   pl.BlockSpec((1, 2, C), lambda i: (i, 0, 0))),
        compiler_params=_cparams(1),
    )(y3, h3, scale.reshape(1, C).astype(F32), shift.reshape(1, C).astype(F32))
    return pooled, stats, _block_counts(R, GB, nb)


# ----------------------------------------------------------------------------
# Kernel 4: pairwise squared distances, tiled over N, pure-VPU formulation
# ----------------------------------------------------------------------------
def square_distance_pallas(src, dst):
    """src: [B,G,3] queries, dst: [B,N,3] points -> [B,G,N] squared distances (f32).
    dst is passed transposed ([B,3,N]) so the kernel reads a lane-dense [3,TN] tile; the
    distance is 3 broadcast-sub-square passes on the VPU (no K=3 f32 MXU contraction)."""
    B, G, _ = src.shape
    N = dst.shape[1]
    src = src.astype(F32)
    dstT = jnp.transpose(dst.astype(F32), (0, 2, 1))      # [B, 3, N]
    TN = min(512, N) if N % LANES == 0 else N
    nt = -(-N // TN)

    def kernel(s_ref, d_ref, o_ref):
        s = s_ref[0]                                      # [G, 3]
        d = d_ref[0]                                      # [3, TN]
        acc = (s[:, 0:1] - d[0:1, :]) ** 2
        acc = acc + (s[:, 1:2] - d[1:2, :]) ** 2
        acc = acc + (s[:, 2:3] - d[2:3, :]) ** 2
        o_ref[0] = acc

    return pl.pallas_call(
        kernel,
        out_shape=jax.ShapeDtypeStruct((B, G, N), F32),
        grid=(B, nt),
        in_specs=[pl.BlockSpec((1, G, 3), lambda b, n: (b, 0, 0)),
                  pl.BlockSpec((1, 3, TN), lambda b, n: (b, 0, n))],
        out_specs=pl.BlockSpec((1, G, TN), lambda b, n: (b, 0, n)),
        compiler_params=_cparams(2),
    )(src, dstT)


# ----------------------------------------------------------------------------
# BN scale/shift from per-block statistics (training-mode torch BN, Chan combine)
# ----------------------------------------------------------------------------
def bn_scale_shift_from_stats(stats, counts, gamma, beta, eps=1e-5):
    """stats: (nb, 2, C) per-block [sum, sumsq]; counts: (nb,) valid rows per block.
    Per-block moments combined with Chan's parallel update (robust vs E[x^2]-E[x]^2)."""
    s = stats[:, 0, :]
    q = stats[:, 1, :]
    n = counts[:, None]
    mean_b = s / n
    m2_b = jnp.maximum(q - s * mean_b, 0.0)

    def comb(carry, blk):
        na, ma, m2a = carry
        nb_, mb, m2b = blk
        nab = na + nb_
        frac = nb_ / nab
        delta = mb - ma
        mab = ma + delta * frac
        m2ab = m2a + m2b + (delta * delta) * (na * frac)
        return (nab, mab, m2ab), None

    C = stats.shape[-1]
    init = (jnp.zeros((), F32), jnp.zeros((C,), F32), jnp.zeros((C,), F32))
    (ntot, mean, m2), _ = lax.scan(comb, init, (counts, mean_b, m2_b))
    var = m2 / ntot                                   # biased variance (torch training BN)
    inv = lax.rsqrt(var + eps)
    scale = gamma * inv                               # padded channels: gamma = 0 -> scale 0
    shift = beta - mean * scale
    return scale, shift


# ----------------------------------------------------------------------------
# PosE_Geo constants: channel j = c*2F + 2f + s ; cos folded as +pi/2 phase,
# coefficient folded into the coordinate-select matrix, zero-padded to 128 lanes.
# ----------------------------------------------------------------------------
def make_pose_constants(out_dim, pad_dim, in_dim=3, alpha=1.0, beta=1.0):
    F_ = out_dim // (in_dim * 2)
    selcoef = np.zeros((in_dim, pad_dim), np.float32)
    phase = np.zeros((1, pad_dim), np.float32)
    for j in range(out_dim):
        c = j // (2 * F_)
        rem = j % (2 * F_)
        f = rem // 2
        s = rem % 2
        selcoef[c, j] = beta / (alpha ** (f / F_))
        phase[0, j] = 0.0 if s == 0 else math.pi / 2.0     # cos(x) = sin(x + pi/2)
    return jnp.asarray(selcoef), jnp.asarray(phase)         # padded channels -> sin(0) = 0


# ----------------------------------------------------------------------------
# JAX glue: FPS / kNN / gather (sequential & sort ops — no clean Pallas form)
# ----------------------------------------------------------------------------
def furthest_point_sample(xyz, npoint, key):
    # TODO(synk): sequential data-dependent argmax loop stays in plain JAX.
    B, N, _ = xyz.shape
    farthest = jax.random.randint(key, (B,), 0, N, dtype=jnp.int32)
    distance = jnp.full((B, N), 1e10, dtype=jnp.float32)
    centroids = jnp.zeros((B, npoint), dtype=jnp.int32)

    def body(i, carry):
        centroids, distance, farthest = carry
        centroids = centroids.at[:, i].set(farthest)
        centroid = jnp.take_along_axis(xyz, farthest[:, None, None], axis=1)
        dist = jnp.sum((xyz - centroid) ** 2, axis=-1)
        distance = jnp.where(dist < distance, dist, distance)
        farthest = jnp.argmax(distance, axis=-1).astype(jnp.int32)
        return centroids, distance, farthest

    centroids, _, _ = jax.lax.fori_loop(0, npoint, body, (centroids, distance, farthest))
    return centroids


def index_points(points, idx):
    return jax.vmap(lambda p, i: p[i])(points, idx)


def knn_point(nsample, xyz, new_xyz):
    sqrdists = square_distance_pallas(new_xyz, xyz)     # Pallas hot path
    _, group_idx = jax.lax.top_k(-sqrdists, nsample)    # TODO(synk): top-k in plain JAX
    return group_idx


# ----------------------------------------------------------------------------
# Parameter init (deterministic, synthetic); everything padded to 128 lanes.
# ----------------------------------------------------------------------------
def init_params(key, embed_dim, num_stages, input_points, k_neighbors, LGA_dim):
    keys = iter(jax.random.split(key, 128))

    def nrm(shape, scale=0.1):
        return scale * jax.random.normal(next(keys), shape, dtype=jnp.float32)

    def pad_vec(v):                                   # gamma/beta -> 128 lanes, zero-padded
        return jnp.pad(v, (0, LANES - v.shape[0]))

    def pad_mat(w, rows, cols):
        return jnp.pad(w, ((0, rows - w.shape[0]), (0, cols - w.shape[1])))

    params = {
        # Conv1d(6, D, 1, bias=False): weight padded to 128 output lanes (zero columns)
        "embed_w": pad_mat(nrm((6, embed_dim)), 6, LANES).astype(BF16),
        "embed_gamma": pad_vec(1.0 + nrm((embed_dim,))),
        "embed_beta": pad_vec(nrm((embed_dim,))),
        "stages": [],
    }
    out_dim = embed_dim
    group_num = input_points
    for i in range(num_stages):
        if LGA_dim[i] in (1, 2):
            out_dim *= 2
            group_num //= 2
        assert out_dim <= LANES, "channel-padding scheme assumes out_dim <= 128"
        half = out_dim // 2                  # channel count of the incoming features
        # LGA.__init__ hard-codes alpha, beta = (1, 1) for PosE_Geo.
        pose_selcoef, pose_phase = make_pose_constants(out_dim, LANES, 3, 1.0, 1.0)
        # Linear1 input is the concat of two 128-padded halves -> (256, 128) weight with
        # the logical rows scattered into the two valid row bands; padded rows/cols are 0.
        w1 = nrm((out_dim, out_dim))
        lin1_w = jnp.zeros((2 * LANES, LANES), jnp.float32)
        lin1_w = lin1_w.at[:half, :out_dim].set(w1[:half])
        lin1_w = lin1_w.at[LANES:LANES + half, :out_dim].set(w1[half:])
        # NOTE: Linear2Layer conv biases cancel exactly under the training-mode BatchNorm
        # that immediately follows each conv, so they are not generated.
        params["stages"].append(dict(
            group_num=group_num, k=k_neighbors, out_dim=out_dim, in_dim=half,
            lin1_w=lin1_w.astype(BF16),                       # Linear1Layer (bias=False)
            lin1_gamma=pad_vec(1.0 + nrm((out_dim,))), lin1_beta=pad_vec(nrm((out_dim,))),
            pose_selcoef=pose_selcoef, pose_phase=pose_phase,
            l2_w1=pad_mat(nrm((out_dim, half)), LANES, LANES).astype(BF16),
            l2_g1=pad_vec(1.0 + nrm((half,))), l2_be1=pad_vec(nrm((half,))),
            l2_w2=pad_mat(nrm((half, out_dim)), LANES, LANES).astype(BF16),
            l2_g2=pad_vec(1.0 + nrm((out_dim,))), l2_be2=pad_vec(nrm((out_dim,))),
            pool_gamma=pad_vec(1.0 + nrm((out_dim,))), pool_beta=pad_vec(nrm((out_dim,))),
        ))
    return params


# ----------------------------------------------------------------------------
# EncNP forward
# ----------------------------------------------------------------------------
def enc_np_forward(params, xyz, x_unused, rgb, rgbx_unused, xyz_ori, x_ori_unused, fps_key):
    del x_unused, rgbx_unused, x_ori_unused   # unused by the torch module's forward
    B, N, _ = xyz.shape

    # raw_point_embed: Conv1d(6, D, 1, bias=False) + BN1d + ReLU (stats fused into matmul)
    feat_in = jnp.transpose(xyz_ori, (0, 2, 1)).reshape(B * N, 6).astype(BF16)
    y0, st0, cnt0 = matmul_bn_fused(feat_in, params["embed_w"])
    sc0, sh0 = bn_scale_shift_from_stats(st0, cnt0,
                                         params["embed_gamma"], params["embed_beta"])
    x = affine_act(y0, sc0, sh0, "relu").reshape(B, N, LANES)       # 128-lane padded bf16

    knn_xyz_out = None
    for i, p in enumerate(params["stages"]):
        G, K, out_dim, c_in = p["group_num"], p["k"], p["out_dim"], p["in_dim"]
        M = B * G * K

        # ---- FPS_kNN (sequential argmax / top-k / gathers in plain JAX) ----
        fps_idx = furthest_point_sample(xyz, G, jax.random.fold_in(fps_key, i))
        lc_xyz = index_points(xyz, fps_idx)                       # [B, G, 3]
        lc_x = index_points(x, fps_idx).astype(F32)                # [B, G, 128]
        lc_rgb = index_points(rgb, fps_idx)
        knn_idx = knn_point(K, xyz, lc_xyz)                        # [B, G, K]
        knn_xyz = index_points(xyz, knn_idx)                       # [B, G, K, 3]
        knn_x = index_points(x, knn_idx).astype(F32)               # [B, G, K, 128]

        # ---- LGA normalization (global scalar std, ddof=1, over the REAL channels) ----
        mean_x = lc_x[:, :, None, :]
        std_x = jnp.std((knn_x - mean_x)[..., :c_in], ddof=1)
        mean_xyz = lc_xyz[:, :, None, :]
        std_xyz = jnp.std(knn_xyz - mean_xyz, ddof=1)
        knn_x_n = (knn_x - mean_x) / (std_x + 1e-5)                # padded lanes stay 0
        knn_xyz_n = (knn_xyz - mean_xyz) / (std_xyz + 1e-5)
        knn_x_cat = jnp.concatenate(
            [knn_x_n, jnp.broadcast_to(lc_x[:, :, None, :], knn_x_n.shape)],
            axis=-1).reshape(M, 2 * LANES).astype(BF16)
        xyz_flat = knn_xyz_n.reshape(M, 3).astype(F32)

        # linear1: Conv1d(out_dim, out_dim, 1, bias=False) -> per-block BN stats in-kernel
        y1, st1, cnt1 = matmul_bn_fused(knn_x_cat, p["lin1_w"])
        sc1, sh1 = bn_scale_shift_from_stats(st1, cnt1, p["lin1_gamma"], p["lin1_beta"])

        # [BN+ReLU apply] + [PosE_Geo add] + [Linear2.net1 matmul] + BN stats, one kernel;
        # 'h' (post-PosE activations) is emitted for the residual path.
        y2, st2, cnt2, h = matmul_bn_fused(
            y1, p["l2_w1"], scale=sc1, shift=sh1, act="relu",
            pose=(xyz_flat, p["pose_selcoef"], p["pose_phase"]), emit_pre=True)
        sc2, sh2 = bn_scale_shift_from_stats(st2, cnt2, p["l2_g1"], p["l2_be1"])

        # [BN+ReLU apply] + [Linear2.net2 matmul] + BN stats
        y3, st3, cnt3 = matmul_bn_fused(y2, p["l2_w2"], scale=sc2, shift=sh2, act="relu")
        sc3, sh3 = bn_scale_shift_from_stats(st3, cnt3, p["l2_g2"], p["l2_be2"])

        # [BN apply] + residual + ReLU + max over K + pooled BN stats
        pooled, st4, cnt4 = bn_res_relu_maxpool(y3, h, sc3, sh3, K)
        sc4, sh4 = bn_scale_shift_from_stats(st4, cnt4, p["pool_gamma"], p["pool_beta"])
        x = affine_act(pooled, sc4, sh4, "gelu").reshape(B, G, LANES)

        xyz, rgb, knn_xyz_out = lc_xyz, lc_rgb, knn_xyz

    # Torch return layouts: x [B, C, G] (padding lanes stripped), knn_xyz [B,G,K,3], xyz [B,G,3]
    out_dim = params["stages"][-1]["out_dim"]
    x_out = jnp.transpose(x[..., :out_dim], (0, 2, 1)).astype(F32)
    return x_out, knn_xyz_out, xyz


# ----------------------------------------------------------------------------
# main
# ----------------------------------------------------------------------------
if __name__ == "__main__":
    B, N = 2, 32
    embed_dim, num_stages, k_neighbors = 24, 2, 8     # out_dims: 48, 96 (divisible by 6)
    LGA_dim = [2, 2]

    key = jax.random.PRNGKey(0)
    k_param, k_xyz, k_rgb, k_ori, k_fps = jax.random.split(key, 5)
    params = init_params(k_param, embed_dim, num_stages, N, k_neighbors, LGA_dim)

    xyz = jax.random.normal(k_xyz, (B, N, 3), dtype=jnp.float32)
    rgb = jax.random.uniform(k_rgb, (B, N, 3), dtype=jnp.float32)
    xyz_ori = jax.random.normal(k_ori, (B, 6, N), dtype=jnp.float32)   # torch NCL layout
    x_dummy = jnp.zeros((B, embed_dim, N), jnp.float32)                # unused by forward
    rgbx_dummy = jnp.zeros((B, N, 3), jnp.float32)                     # unused by forward
    x_ori_dummy = jnp.zeros((B, N, 3), jnp.float32)                    # unused by forward

    x_out, knn_xyz_out, xyz_out = enc_np_forward(
        params, xyz, x_dummy, rgb, rgbx_dummy, xyz_ori, x_ori_dummy, k_fps)
    jax.block_until_ready((x_out, knn_xyz_out, xyz_out))

    last = params["stages"][-1]
    assert x_out.shape == (B, last["out_dim"], last["group_num"])
    assert knn_xyz_out.shape == (B, last["group_num"], k_neighbors, 3)
    assert xyz_out.shape == (B, last["group_num"], 3)
    assert jnp.all(jnp.isfinite(x_out))
    print("KERNEL_OK")
</pallas_src>

<mosaic_0001>
module attributes {stable_mosaic.version = 11 : i64} {
  func.func @kernel(%arg0: i32, %arg1: memref<32x6xbf16, #tpu.memory_space<vmem>>, %arg2: memref<6x128xbf16, #tpu.memory_space<vmem>>, %arg3: memref<32x128xbf16, #tpu.memory_space<vmem>>, %arg4: memref<1x2x128xf32, #tpu.memory_space<vmem>>) attributes {dimension_semantics = [#tpu.dimension_semantics<parallel>], iteration_bounds = array<i64: 2>, scalar_prefetch = 0 : i64, scratch_operands = 0 : i64, tpu.core_type = #tpu.core_type<tc>, window_params = [{transform_indices = @transform_0, window_bounds = array<i64: 32, 6>}, {pipeline_mode = #tpu.pipeline_mode<synchronous>, transform_indices = @transform_1, window_bounds = array<i64: 6, 128>}, {transform_indices = @transform_2, window_bounds = array<i64: 32, 128>}, {transform_indices = @transform_3, window_bounds = array<i64: 1, 2, 128>}]} {
    %c0 = arith.constant 0 : index
    %c0_0 = arith.constant 0 : index
    %0 = vector.load %arg1[%c0, %c0_0] : memref<32x6xbf16, #tpu.memory_space<vmem>>, vector<32x6xbf16>
    %c0_1 = arith.constant 0 : index
    %c0_2 = arith.constant 0 : index
    %1 = vector.load %arg2[%c0_1, %c0_2] : memref<6x128xbf16, #tpu.memory_space<vmem>>, vector<6x128xbf16>
    %cst = arith.constant dense<0.000000e+00> : vector<32x128xf32>
    %2 = tpu.matmul %0, %1, %cst {dimension_numbers = #tpu.dot_dimension_numbers<[1], [0], [0], [1], [0, 0, 1, 1], [], []>} : vector<32x6xbf16>, vector<6x128xbf16>, vector<32x128xf32> -> vector<32x128xf32>
    %3 = arith.truncf %2 : vector<32x128xf32> to vector<32x128xbf16>
    %c0_3 = arith.constant 0 : index
    %c0_4 = arith.constant 0 : index
    %4 = vector.load %arg3[%c0_3, %c0_4] : memref<32x128xbf16, #tpu.memory_space<vmem>>, vector<32x128xbf16>
    tpu.vector_store %arg3[%c0_3, %c0_4], %3 {strides = array<i32>} : memref<32x128xbf16, #tpu.memory_space<vmem>>, vector<32x128xbf16>,
    %5 = arith.mulf %2, %2 : vector<32x128xf32>
    %cst_5 = arith.constant dense<0.000000e+00> : vector<128xf32>
    %6 = vector.multi_reduction <add>, %2, %cst_5 [0] : vector<32x128xf32> to vector<128xf32>
    %7 = vector.shape_cast %6 : vector<128xf32> to vector<1x128xf32>
    %cst_6 = arith.constant dense<0.000000e+00> : vector<128xf32>
    %8 = vector.multi_reduction <add>, %5, %cst_6 [0] : vector<32x128xf32> to vector<128xf32>
    %9 = vector.shape_cast %8 : vector<128xf32> to vector<1x128xf32>
    %10 = tpu.concatenate %7, %9 in 0 : vector<1x128xf32>, vector<1x128xf32> -> vector<2x128xf32>
    %11 = vector.shape_cast %10 : vector<2x128xf32> to vector<1x2x128xf32>
    %c0_7 = arith.constant 0 : index
    %c0_8 = arith.constant 0 : index
    %c0_9 = arith.constant 0 : index
    %12 = vector.load %arg4[%c0_7, %c0_8, %c0_9] : memref<1x2x128xf32, #tpu.memory_space<vmem>>, vector<1x2x128xf32>
    tpu.vector_store %arg4[%c0_7, %c0_8, %c0_9], %11 {strides = array<i32>} : memref<1x2x128xf32, #tpu.memory_space<vmem>>, vector<1x2x128xf32>,
    return
  }
  func.func @transform_0(%arg0: i32) -> (i32, i32) {
    %c0_i32 = arith.constant 0 : i32
    %c0_i32_0 = arith.constant 0 : i32
    return %arg0, %c0_i32 : i32, i32
  }
  func.func @transform_1(%arg0: i32) -> (i32, i32) {
    %c0_i32 = arith.constant 0 : i32
    %c0_i32_0 = arith.constant 0 : i32
    %c0_i32_1 = arith.constant 0 : i32
    return %c0_i32, %c0_i32_0 : i32, i32
  }
  func.func @transform_2(%arg0: i32) -> (i32, i32) {
    %c0_i32 = arith.constant 0 : i32
    %c0_i32_0 = arith.constant 0 : i32
    return %arg0, %c0_i32 : i32, i32
  }
  func.func @transform_3(%arg0: i32) -> (i32, i32, i32) {
    %c0_i32 = arith.constant 0 : i32
    %c0_i32_0 = arith.constant 0 : i32
    %c0_i32_1 = arith.constant 0 : i32
    return %arg0, %c0_i32, %c0_i32_0 : i32, i32, i32
  }
}

</mosaic_0001>

<llo_original>
// kernel: tpu_custom_call.1
$region0: #{tpu_custom_call.1}
  #allocation0 [shape = 'u32[]', space=smem, size = 0x4, offset = 0x4, fixed_abs, tag = 'smem constant byte address 0x4 - core index']
  #allocation1 [shape = 'u32[144,128]{1,0:T(1,128)}', space=vmem, size = 0x12000, scoped, tag = 'internal scratch']
  %s0 = inlined_call_operand.hbm [shape: bf16[64,6], index: 0, kind: input, shape index: {}]
  %s1 = inlined_call_operand.hbm [shape: bf16[6,128], index: 1, kind: input, shape index: {}]
  %s2 = inlined_call_operand.hbm [shape: bf16[64,128], index: 2, kind: output, shape index: {0}]
  %s3 = inlined_call_operand.hbm [shape: f32[2,2,128], index: 3, kind: output, shape index: {1}]
  %4 = xla_tuple %s2, %s3
  %s5 = sld [smem:[#allocation0]]
  $region57: #{tpu_custom_call.1} parent=0
    _
  %s7 = ssub.s32 1, %s5
  %s8 = scalar_select 0, %s7, %s5
  $region1: #{tpu_custom_call.1} parent=0
    #allocation2 [shape = 'u8[16384]{0}', space=vmem, size = 0x4000, scoped, tag = 'input window, operand 0']
    #allocation3 [shape = 's32[2]{0}', space=sflag, size = 0x8, scoped, tag = 'scoped memory for tpu_custom_call.1']
    #allocation4 [shape = 's32[2]{0}', space=sflag, size = 0x8, scoped, tag = 'scoped memory for tpu_custom_call.1']
    #allocation5 [shape = 'u8[2048]{0}', space=vmem, size = 0x800, scoped, tag = 'input window, operand 1, single buffered']
    #allocation6 [shape = 's32[1]{0}', space=sflag, size = 0x4, scoped, tag = 'scoped memory for tpu_custom_call.1']
    #allocation7 [shape = 'u8[16384]{0}', space=vmem, size = 0x4000, scoped, tag = 'output window, operand 0']
    #allocation8 [shape = 'u8[2048]{0}', space=vmem, size = 0x800, scoped, tag = 'output window, operand 1']
    #allocation9 [shape = 's32[2]{0}', space=sflag, size = 0x8, scoped, tag = 'scoped memory for tpu_custom_call.1']
    %9 = vsyncpa [#allocation3], 0
    %s10 = scalar_lea.sflag [#allocation3], 1
    %11 = vsyncpa %s10, 0
    %12 = vsyncpa [#allocation6], 0
    %13 = vsyncpa [#allocation4], 0
    %s14 = scalar_lea.sflag [#allocation4], 1
    %15 = vsyncpa %s14, 0
    %16 = vsyncpa [#allocation9], 0
    %s17 = scalar_lea.sflag [#allocation9], 1
    %18 = vsyncpa %s17, 0
    loop: start=0, step=1, limit=4
    $region2: #{tpu_custom_call.1} parent=1 // loop_pre_header
      _
    $region3: #{tpu_custom_call.1} parent=1 // loop_header
      %s20 = sphi 0, %s24
      %p21 = scmp.ge.s32.totalorder %s20, 4
      %s30 = sphi 0, %s32
      %s33 = sphi 0, %s30
      %s34 = sphi 0, %s33
      %s50 = sphi 0, %s34
      %s54 = sphi 0, %s54
      %s56 = sphi 0, %s54
      %s57 = sphi 0, %s56
      %s71 = sphi 0, %s57
      %s77 = sphi 0, %s79
      %s80 = sphi 0, %s77
      %s81 = sphi 0, %s80
      %s97 = sphi 0, %s81
      %s103 = sphi 0, %s105
      %s106 = sphi 0, %s103
      %s107 = sphi 0, %s106
      %s123 = sphi 0, %s107
    $region4: #{tpu_custom_call.1} parent=1 // loop_header_branch
      %23 = sbr.rel (%p21) target = $region8
    $region5: #{tpu_custom_call.1} parent=1 // loop_body
      %s25 = ssub.s32 %s20, 1
      %s26 = ssub.s32 %s20, 2
      %s27 = sadd.s32 %s20, 1
      %s28 = ssub.s32 %s20, %s27
      %p29 = scmp.eq.s32.totalorder %s28, 0
      %s31 = sadd.s32 %s30, 1
      %s32 = scalar_select %p29, %s30, %s31
      %p35 = pneg %p29
      %p36 = scmp.eq.s32.totalorder %s20, 1
      %p37 = por %p35, %p36
      %p38 = scmp.ne.s32.totalorder %s30, %s33
      %p39 = scmp.eq.s32.totalorder %s20, 0
      %p40 = por %p38, %p39
      %p41 = scmp.ne.s32.totalorder %s30, %s33
      %p42 = scmp.eq.s32.totalorder %s25, 1
      %p43 = por %p41, %p42
      %p44 = scmp.ne.s32.totalorder %s33, %s34
      %p45 = scmp.eq.s32.totalorder %s25, 0
      %p46 = por %p44, %p45
      %p47 = scmp.ne.s32.totalorder %s33, %s34
      %p48 = scmp.eq.s32.totalorder %s26, 1
      %p49 = por %p47, %p48
      %p51 = scmp.ne.s32.totalorder %s34, %s50
      %p52 = scmp.eq.s32.totalorder %s26, 0
      %p53 = por %p51, %p52
      %s55 = sadd.s32 %s54, 1
      %p58 = scmp.eq.s32.totalorder %s20, 1
      %p59 = scmp.ne.s32.totalorder %s54, %s56
      %p60 = scmp.eq.s32.totalorder %s20, 0
      %p61 = por %p59, %p60
      %p62 = scmp.ne.s32.totalorder %s54, %s56
      %p63 = scmp.eq.s32.totalorder %s25, 1
      %p64 = por %p62, %p63
      %p65 = scmp.ne.s32.totalorder %s56, %s57
      %p66 = scmp.eq.s32.totalorder %s25, 0
      %p67 = por %p65, %p66
      %p68 = scmp.ne.s32.totalorder %s56, %s57
      %p69 = scmp.eq.s32.totalorder %s26, 1
      %p70 = por %p68, %p69
      %p72 = scmp.ne.s32.totalorder %s57, %s71
      %p73 = scmp.eq.s32.totalorder %s26, 0
      %p74 = por %p72, %p73
      %s75 = ssub.s32 %s20, %s27
      %p76 = scmp.eq.s32.totalorder %s75, 0
      %s78 = sadd.s32 %s77, 1
      %s79 = scalar_select %p76, %s77, %s78
      %p82 = pneg %p76
      %p83 = scmp.eq.s32.totalorder %s20, 1
      %p84 = por %p82, %p83
      %p85 = scmp.ne.s32.totalorder %s77, %s80
      %p86 = scmp.eq.s32.totalorder %s20, 0
      %p87 = por %p85, %p86
      %p88 = scmp.ne.s32.totalorder %s77, %s80
      %p89 = scmp.eq.s32.totalorder %s25, 1
      %p90 = por %p88, %p89
      %p91 = scmp.ne.s32.totalorder %s80, %s81
      %p92 = scmp.eq.s32.totalorder %s25, 0
      %p93 = por %p91, %p92
      %p94 = scmp.ne.s32.totalorder %s80, %s81
      %p95 = scmp.eq.s32.totalorder %s26, 1
      %p96 = por %p94, %p95
      %p98 = scmp.ne.s32.totalorder %s81, %s97
      %p99 = scmp.eq.s32.totalorder %s26, 0
      %p100 = por %p98, %p99
      %s101 = ssub.s32 %s20, %s27
      %p102 = scmp.eq.s32.totalorder %s101, 0
      %s104 = sadd.s32 %s103, 1
      %s105 = scalar_select %p102, %s103, %s104
      %p108 = pneg %p102
      %p109 = scmp.eq.s32.totalorder %s20, 1
      %p110 = por %p108, %p109
      %p111 = scmp.ne.s32.totalorder %s103, %s106
      %p112 = scmp.eq.s32.totalorder %s20, 0
      %p113 = por %p111, %p112
      %p114 = scmp.ne.s32.totalorder %s103, %s106
      %p115 = scmp.eq.s32.totalorder %s25, 1
      %p116 = por %p114, %p115
      %p117 = scmp.ne.s32.totalorder %s106, %s107
      %p118 = scmp.eq.s32.totalorder %s25, 0
      %p119 = por %p117, %p118
      %p120 = scmp.ne.s32.totalorder %s106, %s107
      %p121 = scmp.eq.s32.totalorder %s26, 1
      %p122 = por %p120, %p121
      %p124 = scmp.ne.s32.totalorder %s107, %s123
      %p125 = scmp.eq.s32.totalorder %s26, 0
      %p126 = por %p124, %p125
      %p127 = scmp.le.s32.totalorder 1, %s20
      %p128 = scmp.lt.s32.totalorder %s20, 3
      %p129 = pnand %p127, %p128
      %p130 = pneg %p129
      // Predicated region
      $region9: #{tpu_custom_call.1} parent=5 // pred_check
        _
      $region10: #{tpu_custom_call.1} parent=5 // pred_check_branch
        %132 = sbr.rel (%p129) target = $region12
      $region11: #{tpu_custom_call.1} parent=5 // pred_region
        %s133 = ssub.s32 %s20, 1
        // Predicated region
        $region13: #{tpu_custom_call.1} parent=11 // pred_check
          %p134 = pneg %p67
        $region14: #{tpu_custom_call.1} parent=11 // pred_check_branch
          %136 = sbr.rel (%p134) target = $region16
        $region15: #{tpu_custom_call.1} parent=11 // pred_region
          %s138 = ssub.s32 64, 64
          %139 = vsyncadd [#allocation6], %s138
          %s141 = sshll.u32 [#allocation5], 4
          %s142 = int_to_ptr.vmem [resolvable:$true] %s141
          %144 = dma.hbm_to_vmem [thread:$0]  %s1, 64, %s142, [#allocation6]
        $region16: #{tpu_custom_call.1} parent=11 // pred_fallthru
          _
      $region12: #{tpu_custom_call.1} parent=5 // pred_fallthru
        _
      %p145 = scmp.lt.s32.totalorder %s20, 2
      // Predicated region
      $region17: #{tpu_custom_call.1} parent=5 // pred_check
        %p146 = pneg %p145
      $region18: #{tpu_custom_call.1} parent=5 // pred_check_branch
        %148 = sbr.rel (%p146) target = $region20
      $region19: #{tpu_custom_call.1} parent=5 // pred_region
        // Predicated region
        $region21: #{tpu_custom_call.1} parent=19 // pred_check
          %p149 = pneg %p40
        $region22: #{tpu_custom_call.1} parent=19 // pred_check_branch
          %151 = sbr.rel (%p149) target = $region24
        $region23: #{tpu_custom_call.1} parent=19 // pred_region
          %s152 = sand.u32 %s30, 1
          %s153 = scalar_lea.sflag [#allocation3], %s152
          %s154 = sand.u32 %s30, 1
          %s155 = smul.addr %s154, 16
          %s156 = scalar_lea.vmem [#allocation2], %s155
          %s157 = smul.u32 4, %s20
          %s159 = ssub.s32 256, 256
          %160 = vsyncadd %s153, %s159
          %s161 = smul.addr %s157, 64
          %s162 = scalar_lea.hbm %s0, %s161
          %s163 = sshll.u32 %s156, 4
          %s164 = int_to_ptr.vmem [resolvable:$true] %s163
          %169 = dma.hbm_to_vmem [thread:$0]  %s162, 256, %s164, %s153, 64, 64, 4
        $region24: #{tpu_custom_call.1} parent=19 // pred_fallthru
          _
      $region20: #{tpu_custom_call.1} parent=5 // pred_fallthru
        _
      %p170 = scmp.le.s32.totalorder 1, %s20
      %p171 = scmp.lt.s32.totalorder %s20, 3
      %p172 = pnand %p170, %p171
      %p173 = pneg %p172
      // Predicated region
      $region25: #{tpu_custom_call.1} parent=5 // pred_check
        _
      $region26: #{tpu_custom_call.1} parent=5 // pred_check_branch
        %175 = sbr.rel (%p172) target = $region28
      $region27: #{tpu_custom_call.1} parent=5 // pred_region
        %s176 = ssub.s32 %s20, 1
        %s177 = sand.u32 %s33, 1
        %s178 = scalar_lea.sflag [#allocation3], %s177
        %s179 = sand.u32 %s33, 1
        %s180 = smul.addr %s179, 16
        %s181 = scalar_lea.vmem [#allocation2], %s180
        // Predicated region
        $region29: #{tpu_custom_call.1} parent=27 // pred_check
          %p182 = pneg %p46
        $region30: #{tpu_custom_call.1} parent=27 // pred_check_branch
          %184 = sbr.rel (%p182) target = $region32
        $region31: #{tpu_custom_call.1} parent=27 // pred_region
          %185 = dma.done %s178, 256
        $region32: #{tpu_custom_call.1} parent=27 // pred_fallthru
          _
        // Predicated region
        $region33: #{tpu_custom_call.1} parent=27 // pred_check
          %p186 = pneg %p67
        $region34: #{tpu_custom_call.1} parent=27 // pred_check_branch
          %188 = sbr.rel (%p186) target = $region36
        $region35: #{tpu_custom_call.1} parent=27 // pred_region
          %189 = dma.done [#allocation6], 64
        $region36: #{tpu_custom_call.1} parent=27 // pred_fallthru
          _
        %s190 = sand.u32 %s33, 1
        %s191 = scalar_lea.sflag [#allocation3], %s190
        %s192 = sand.u32 %s33, 1
        %s193 = smul.addr %s192, 16
        %s194 = scalar_lea.vmem [#allocation2], %s193
        %p195 = pneg %p46
        %p196 = pneg %p43
        %p197 = pneg %p67
        %p198 = pneg %p64
        %p199 = pneg %p93
        %p200 = pneg %p90
        %s201 = sand.u32 %s80, 1
        %s202 = scalar_lea.sflag [#allocation4], %s201
        %s203 = sand.u32 %s80, 1
        %s204 = smul.addr %s203, 16
        %s205 = scalar_lea.vmem [#allocation7], %s204
        %p206 = pneg %p119
        %p207 = pneg %p116
        %s208 = sand.u32 %s106, 1
        %s209 = scalar_lea.sflag [#allocation9], %s208
        %s210 = sand.u32 %s106, 1
        %s211 = smul.addr %s210, 2
        %s212 = scalar_lea.vmem [#allocation8], %s211
        %s213 = smul.u32 4, %s25
        %s214 = smul.u32 4, %s25
        %v216 = vld [vmem:[%s181] sm:$0xf]
        %v217 = vld [vmem:[%s181 + $0x4] sm:$0xf]
        %v218 = vld [vmem:[%s181 + $0x8] sm:$0xf]
        %v219 = vld [vmem:[%s181 + $0xc] sm:$0xf]
        %v220 = vld [vmem:[#allocation5] sm:$0x7]
        %v225 = vunpack.c.l.b16 %v216
        %v226 = vunpack.c.l.b16 %v217
        %v227 = vunpack.c.l.b16 %v218
        %v228 = vunpack.c.l.b16 %v219
        %v229 = vpack.c.b16 %v226, %v225
        %v230 = vpack.c.b16 %v228, %v227
        %vm231 = vcmask 48128
        %v233 = vsel %vm231, %v229, 0
        %v236 = vsel %vm231, %v230, 0
        %vm238 = vcmask 1042432
        %v240 = vsel %vm238, %v220, 0
        %242 = vmatprep.subr.bf16.mxu0 0
        %243 = vmatpush1.bf16.msra.mxu0 %v240
        %244 = vmatprep.subr.bf16.mxu0 0
        %245 = vmatpush1.bf16.msra.mxu0 0
        %246 = vmatprep.subr.bf16.mxu0 0
        %247 = vmatpush1.bf16.msra.mxu0 0
        %248 = vmatprep.subr.bf16.mxu0 0
        %249 = vmatpush1.bf16.msra.mxu0 0
        %250 = vmatprep.subr.bf16.mxu0 0
        %251 = vmatpush1.bf16.msra.mxu0 0
        %252 = vmatprep.subr.bf16.mxu0 0
        %253 = vmatpush1.bf16.msra.mxu0 0
        %254 = vmatprep.subr.bf16.mxu0 0
        %255 = vmatpush1.bf16.msra.mxu0 0
        %256 = vmatprep.subr.bf16.mxu0 0
        %257 = vmatpush1.bf16.msra.mxu0 0
        %258 = vmatprep.subr.bf16.mxu0 0
        %259 = vmatpush1.bf16.msra.mxu0 0
        %260 = vmatprep.subr.bf16.mxu0 0
        %261 = vmatpush1.bf16.msra.mxu0 0
        %262 = vmatprep.subr.bf16.mxu0 0
        %263 = vmatpush1.bf16.msra.mxu0 0
        %264 = vmatprep.subr.bf16.mxu0 0
        %265 = vmatpush1.bf16.msra.mxu0 0
        %266 = vmatprep.subr.bf16.mxu0 0
        %267 = vmatpush1.bf16.msra.mxu0 0
        %268 = vmatprep.subr.bf16.mxu0 0
        %269 = vmatpush1.bf16.msra.mxu0 0
        %270 = vmatprep.subr.bf16.mxu0 0
        %271 = vmatpush1.bf16.msra.mxu0 0
        %272 = vmatprep.subr.bf16.mxu0 0
        %273 = vmatpush1.bf16.msra.mxu0 0
        %274 = vmatprep.mubr.bf16.mxu0 0
        %275 = vmatmul.mubr.bf16.gmra.mrb[0].mxu0 %v233
        %v276 = vpop.f32.mrb[0].mxu0
        %v277 = vadd.f32 0.0, %v276
        %v278 = vpop.f32.mrb[0].mxu0
        %v279 = vpop.f32.mrb[0].mxu0
        %v280 = vadd.f32 0.0, %v279
        %v281 = vpop.f32.mrb[0].mxu0
        %282 = vmatprep.mubr.bf16.mxu0 0
        %283 = vmatmul.mubr.bf16.gmra.mrb[0].mxu0 %v236
        %v284 = vpop.f32.mrb[0].mxu0
        %v285 = vadd.f32 0.0, %v284
        %v286 = vpop.f32.mrb[0].mxu0
        %v287 = vpop.f32.mrb[0].mxu0
        %v288 = vadd.f32 0.0, %v287
        %v289 = vpop.f32.mrb[0].mxu0
        %290 = vdwg.mxu0
        %v291 = vpack.c.bf16 %v280, %v277
        %v292 = vpack.c.bf16 %v288, %v285
        %v295 = vunpack.c.l.b16 %v291
        %v296 = vunpack.c.h.b16 %v291
        %v297 = vunpack.c.l.b16 %v292
        %v298 = vunpack.c.h.b16 %v292
        %v299 = vpack.c.b16 %v295, %v295
        %v300 = vpack.c.b16 %v296, %v296
        %v301 = vpack.c.b16 %v297, %v297
        %v302 = vpack.c.b16 %v298, %v298
        %307 = vst [vmem:[%s205] sm:$0xf] %v299
        %308 = vst [vmem:[%s205 + $0x4] sm:$0xf] %v300
        %309 = vst [vmem:[%s205 + $0x8] sm:$0xf] %v301
        %310 = vst [vmem:[%s205 + $0xc] sm:$0xf] %v302
        %v311 = vmul.f32 %v277, %v277
        %v312 = vmul.f32 %v280, %v280
        %v313 = vmul.f32 %v285, %v285
        %v314 = vmul.f32 %v288, %v288
        %v315 = vadd.f32 %v277, %v280
        %v316 = vadd.f32 %v315, %v285
        %v317 = vadd.f32 %v316, %v288
        %v318 = vrot.slane %v317, 4
        %v319 = vadd.f32 %v317, %v318
        %v320 = vrot.slane %v319, 2
        %v321 = vadd.f32 %v319, %v320
        %v322 = vrot.slane %v321, 1
        %v323 = vadd.f32 %v321, %v322
        %v324 = vadd.f32 %v311, %v312
        %v325 = vadd.f32 %v324, %v313
        %v326 = vadd.f32 %v325, %v314
        %v327 = vrot.slane %v326, 4
        %v328 = vadd.f32 %v326, %v327
        %v329 = vrot.slane %v328, 2
        %v330 = vadd.f32 %v328, %v329
        %v331 = vrot.slane %v330, 1
        %v332 = vadd.f32 %v330, %v331
        %vm333 = vcmask 1040384
        %v334 = vsel %vm333, %v323, %v332
        %335 = vst [vmem:[%s212] sm:$0x3] %v334
        %s336 = sand.u32 %s80, 1
        %s337 = scalar_lea.sflag [#allocation4], %s336
        %s338 = sand.u32 %s80, 1
        %s339 = smul.addr %s338, 16
        %s340 = scalar_lea.vmem [#allocation7], %s339
        %s341 = sand.u32 %s106, 1
        %s342 = scalar_lea.sflag [#allocation9], %s341
        %s343 = sand.u32 %s106, 1
        %s344 = smul.addr %s343, 2
        %s345 = scalar_lea.vmem [#allocation8], %s344
        // Predicated region
        $region37: #{tpu_custom_call.1} parent=27 // pred_check
          %p346 = pneg %p90
        $region38: #{tpu_custom_call.1} parent=27 // pred_check_branch
          %348 = sbr.rel (%p346) target = $region40
        $region39: #{tpu_custom_call.1} parent=27 // pred_region
          %s349 = smul.u32 4, %s25
          %s351 = ssub.s32 256, 256
          %352 = vsyncadd %s337, %s351
          %s353 = smul.addr %s349, 64
          %s354 = scalar_lea.hbm %s2, %s353
          %s355 = sshll.u32 %s340, 4
          %s356 = int_to_ptr.vmem [resolvable:$true] %s355
          %361 = dma.vmem_to_hbm [thread:$0]  %s356, 256, %s354, %s337, 64, 64, 4
        $region40: #{tpu_custom_call.1} parent=27 // pred_fallthru
          _
        // Predicated region
        $region41: #{tpu_custom_call.1} parent=27 // pred_check
          %p362 = pneg %p116
        $region42: #{tpu_custom_call.1} parent=27 // pred_check_branch
          %364 = sbr.rel (%p362) target = $region44
        $region43: #{tpu_custom_call.1} parent=27 // pred_region
          %s366 = ssub.s32 32, 32
          %367 = vsyncadd %s342, %s366
          %s368 = smul.addr %s25, 32
          %s369 = scalar_lea.hbm %s3, %s368
          %s371 = sshll.u32 %s345, 4
          %s372 = int_to_ptr.vmem [resolvable:$true] %s371
          %374 = dma.vmem_to_hbm [thread:$0]  %s372, 32, %s369, %s342
        $region44: #{tpu_custom_call.1} parent=27 // pred_fallthru
          _
      $region28: #{tpu_custom_call.1} parent=5 // pred_fallthru
        _
      %p375 = scmp.le.s32.totalorder 2, %s20
      // Predicated region
      $region45: #{tpu_custom_call.1} parent=5 // pred_check
        %p376 = pneg %p375
      $region46: #{tpu_custom_call.1} parent=5 // pred_check_branch
        %378 = sbr.rel (%p376) target = $region48
      $region47: #{tpu_custom_call.1} parent=5 // pred_region
        %s379 = ssub.s32 %s20, 2
        // Predicated region
        $region49: #{tpu_custom_call.1} parent=47 // pred_check
          %p380 = pneg %p96
        $region50: #{tpu_custom_call.1} parent=47 // pred_check_branch
          %382 = sbr.rel (%p380) target = $region52
        $region51: #{tpu_custom_call.1} parent=47 // pred_region
          %s383 = sand.u32 %s81, 1
          %s384 = scalar_lea.sflag [#allocation4], %s383
          %s385 = sand.u32 %s81, 1
          %s386 = smul.addr %s385, 16
          %s387 = scalar_lea.vmem [#allocation7], %s386
          %388 = dma.done %s384, 256
        $region52: #{tpu_custom_call.1} parent=47 // pred_fallthru
          _
        // Predicated region
        $region53: #{tpu_custom_call.1} parent=47 // pred_check
          %p389 = pneg %p122
        $region54: #{tpu_custom_call.1} parent=47 // pred_check_branch
          %391 = sbr.rel (%p389) target = $region56
        $region55: #{tpu_custom_call.1} parent=47 // pred_region
          %s392 = sand.u32 %s107, 1
          %s393 = scalar_lea.sflag [#allocation9], %s392
          %s394 = sand.u32 %s107, 1
          %s395 = smul.addr %s394, 2
          %s396 = scalar_lea.vmem [#allocation8], %s395
          %397 = dma.done %s393, 32
        $region56: #{tpu_custom_call.1} parent=47 // pred_fallthru
          _
      $region48: #{tpu_custom_call.1} parent=5 // pred_fallthru
        _
    $region6: #{tpu_custom_call.1} parent=1 // loop_footer
      %s24 = sadd.s32 1, %s20
    $region7: #{tpu_custom_call.1} parent=1 // loop_footer_branch
      %19 = sbr.rel target = $region3
    $region8: #{tpu_custom_call.1} parent=1 // loop_exit
      _
    %398 = vsyncpa [#allocation3], 1
    %s399 = scalar_lea.sflag [#allocation3], 1
    %400 = vsyncpa %s399, 1
    %401 = vsyncpa [#allocation6], 1
    %402 = vsyncpa [#allocation4], 1
    %s403 = scalar_lea.sflag [#allocation4], 1
    %404 = vsyncpa %s403, 1
    %405 = vsyncpa [#allocation9], 1
    %s406 = scalar_lea.sflag [#allocation9], 1
    %407 = vsyncpa %s406, 1

</llo_original>
